<compile_context>
chip_gen: v5e
topology: v5e:2x2
jax: 0.10.0
libtpu: 0.0.40
codegen_flags: <defaults>
</compile_context>

<pallas_src>
import jax
import jax.numpy as jnp
from jax.experimental import pallas as pl
from jax.experimental.pallas import tpu as pltpu


def _net_kernel(params_ref, x_ref, o_ref):
    # params_ref holds [4.9*g1, 4.9*g2, 4.9*g3, 4.9*g4, 4.9*g5, 4.9*b1, 4.9*b2]
    a1 = params_ref[0]
    a2 = params_ref[1]
    a3 = params_ref[2]
    a4 = params_ref[3]
    a5 = params_ref[4]
    c1 = params_ref[5]
    c2 = params_ref[6]

    x1 = x_ref[0]              # (tb, tf)
    x2 = x_ref[1]              # (tb, tf)

    h1 = jax.nn.sigmoid(x1 * a1 + x2 * a2 + c1)
    o_ref[...] = jax.nn.sigmoid(x1 * a3 + h1 * a4 + x2 * a5 + c2)


def _round_up(v, m):
    return ((v + m - 1) // m) * m


def _pick_tf(F):
    """Lane tile: a multiple of 128 that divides F, else the full extent."""
    if F % 128 != 0:
        return F                      # full-extent block is always legal
    for cand in (1024, 512, 256, 128):
        if cand <= F and F % cand == 0:
            return cand
    return F


def _pick_tb(B, tf, target_tile_elems):
    """Row tile: multiple of 8, sized so tb*tf ~= target_tile_elems."""
    b_ceil = _round_up(max(B, 1), 8)
    tb = max(8, (target_tile_elems // max(tf, 1)) // 8 * 8)
    tb = min(tb, b_ceil)
    # Keep at least 2 row tiles when there is enough work (v7x has 2 TCs;
    # a 1-step grid would serialize on one of them).  No-op on v5e/v6e.
    if B >= 16 and tb >= b_ceil:
        tb = max(8, _round_up(b_ceil // 2, 8))
    return tb


def net_forward(x, params, *, target_tile_elems=512 * 512,
                vmem_limit_bytes=32 * 1024 * 1024):
    """x: [2, B, F] float32, params: [7] = [g1..g5, b1, b2] -> o1: [B, F]."""
    assert x.ndim == 3 and x.shape[0] == 2, "expected x of shape [2, B, F]"
    _, B, F = x.shape

    # Fold the 4.9 gain into the 7 scalars once, wrapper-side (free).
    scaled = (4.9 * params).astype(jnp.float32)

    tf = _pick_tf(F)
    tb = _pick_tb(B, tf, target_tile_elems)
    grid = (pl.cdiv(B, tb), pl.cdiv(F, tf))

    return pl.pallas_call(
        _net_kernel,
        out_shape=jax.ShapeDtypeStruct((B, F), jnp.float32),
        grid=grid,
        in_specs=[
            pl.BlockSpec(memory_space=pltpu.MemorySpace.SMEM),      # 7 scalars
            pl.BlockSpec((2, tb, tf), lambda i, j: (0, i, j)),      # both nodes
        ],
        out_specs=pl.BlockSpec((tb, tf), lambda i, j: (i, j)),
        compiler_params=pltpu.CompilerParams(
            dimension_semantics=("parallel", "parallel"),
            vmem_limit_bytes=vmem_limit_bytes,
        ),
    )(scaled, x)


def reference_forward(x, params):
    g1, g2, g3, g4, g5, b1, b2 = [params[i] for i in range(7)]
    x1, x2 = x[0], x[1]
    h1 = jax.nn.sigmoid(4.9 * (x1 * g1 + x2 * g2 + b1))
    return jax.nn.sigmoid(4.9 * (x1 * g3 + h1 * g4 + x2 * g5 + b2))


if __name__ == "__main__":
    key = jax.random.PRNGKey(0)
    k_params, k_x1, k_x2 = jax.random.split(key, 3)

    # 7 standard-normal scalars: [g1, g2, g3, g4, g5, b1, b2]
    # (the module draws torch.randn(1) for every parameter)
    params = jax.random.normal(k_params, (7,), dtype=jnp.float32)

    # Small case: single tile.
    B, F = 8, 128
    x = jax.random.normal(k_x1, (2, B, F), dtype=jnp.float32)
    out = jax.block_until_ready(net_forward(x, params))
    ref = reference_forward(x, params)
    assert out.shape == (B, F)
    assert jnp.allclose(out, ref, atol=1e-6, rtol=1e-6)

    # Ragged case: batch not a multiple of the row tile, multiple grid steps,
    # no wrapper-side pad/slice (Pallas masks the partial last block).
    B2, F2 = 300, 256
    x2 = jax.random.normal(k_x2, (2, B2, F2), dtype=jnp.float32)
    out2 = jax.block_until_ready(
        net_forward(x2, params, target_tile_elems=128 * 256))
    ref2 = reference_forward(x2, params)
    assert out2.shape == (B2, F2)
    assert jnp.allclose(out2, ref2, atol=1e-6, rtol=1e-6)

    print("KERNEL_OK")
</pallas_src>

<mosaic_0001>
module attributes {stable_mosaic.version = 11 : i64} {
  func.func @_net_kernel(%arg0: i32, %arg1: i32, %arg2: memref<7xf32, #tpu.memory_space<smem>>, %arg3: memref<2x8x128xf32, #tpu.memory_space<vmem>>, %arg4: memref<8x128xf32, #tpu.memory_space<vmem>>) attributes {dimension_semantics = [#tpu.dimension_semantics<parallel>, #tpu.dimension_semantics<parallel>], iteration_bounds = array<i64: 1, 1>, scalar_prefetch = 0 : i64, scratch_operands = 0 : i64, tpu.core_type = #tpu.core_type<tc>, window_params = [{transform_indices = @transform_0, window_bounds = array<i64: 7>}, {transform_indices = @transform_1, window_bounds = array<i64: 2, 8, 128>}, {transform_indices = @transform_2, window_bounds = array<i64: 8, 128>}]} {
    %c0 = arith.constant 0 : index
    %0 = memref.load %arg2[%c0] : memref<7xf32, #tpu.memory_space<smem>>
    %c1 = arith.constant 1 : index
    %1 = memref.load %arg2[%c1] : memref<7xf32, #tpu.memory_space<smem>>
    %c2 = arith.constant 2 : index
    %2 = memref.load %arg2[%c2] : memref<7xf32, #tpu.memory_space<smem>>
    %c3 = arith.constant 3 : index
    %3 = memref.load %arg2[%c3] : memref<7xf32, #tpu.memory_space<smem>>
    %c4 = arith.constant 4 : index
    %4 = memref.load %arg2[%c4] : memref<7xf32, #tpu.memory_space<smem>>
    %c5 = arith.constant 5 : index
    %5 = memref.load %arg2[%c5] : memref<7xf32, #tpu.memory_space<smem>>
    %c6 = arith.constant 6 : index
    %6 = memref.load %arg2[%c6] : memref<7xf32, #tpu.memory_space<smem>>
    %c0_0 = arith.constant 0 : index
    %c0_1 = arith.constant 0 : index
    %c0_2 = arith.constant 0 : index
    %7 = vector.load %arg3[%c0_0, %c0_1, %c0_2] : memref<2x8x128xf32, #tpu.memory_space<vmem>>, vector<1x8x128xf32>
    %8 = vector.shape_cast %7 : vector<1x8x128xf32> to vector<8x128xf32>
    %c1_3 = arith.constant 1 : index
    %c0_4 = arith.constant 0 : index
    %c0_5 = arith.constant 0 : index
    %9 = vector.load %arg3[%c1_3, %c0_4, %c0_5] : memref<2x8x128xf32, #tpu.memory_space<vmem>>, vector<1x8x128xf32>
    %10 = vector.shape_cast %9 : vector<1x8x128xf32> to vector<8x128xf32>
    %11 = vector.broadcast %0 : f32 to vector<8x128xf32>
    %12 = arith.mulf %8, %11 : vector<8x128xf32>
    %13 = vector.broadcast %1 : f32 to vector<8x128xf32>
    %14 = arith.mulf %10, %13 : vector<8x128xf32>
    %15 = arith.addf %12, %14 : vector<8x128xf32>
    %16 = vector.broadcast %5 : f32 to vector<8x128xf32>
    %17 = arith.addf %15, %16 : vector<8x128xf32>
    %18 = arith.negf %17 : vector<8x128xf32>
    %19 = math.exp %18 : vector<8x128xf32>
    %cst = arith.constant 1.000000e+00 : f32
    %20 = vector.broadcast %cst : f32 to vector<8x128xf32>
    %21 = arith.addf %20, %19 : vector<8x128xf32>
    %22 = arith.divf %20, %21 : vector<8x128xf32>
    %23 = vector.broadcast %2 : f32 to vector<8x128xf32>
    %24 = arith.mulf %8, %23 : vector<8x128xf32>
    %25 = vector.broadcast %3 : f32 to vector<8x128xf32>
    %26 = arith.mulf %22, %25 : vector<8x128xf32>
    %27 = arith.addf %24, %26 : vector<8x128xf32>
    %28 = vector.broadcast %4 : f32 to vector<8x128xf32>
    %29 = arith.mulf %10, %28 : vector<8x128xf32>
    %30 = arith.addf %27, %29 : vector<8x128xf32>
    %31 = vector.broadcast %6 : f32 to vector<8x128xf32>
    %32 = arith.addf %30, %31 : vector<8x128xf32>
    %33 = arith.negf %32 : vector<8x128xf32>
    %34 = math.exp %33 : vector<8x128xf32>
    %cst_6 = arith.constant 1.000000e+00 : f32
    %35 = vector.broadcast %cst_6 : f32 to vector<8x128xf32>
    %36 = arith.addf %35, %34 : vector<8x128xf32>
    %37 = arith.divf %35, %36 : vector<8x128xf32>
    %c0_7 = arith.constant 0 : index
    %c0_8 = arith.constant 0 : index
    %38 = vector.load %arg4[%c0_7, %c0_8] : memref<8x128xf32, #tpu.memory_space<vmem>>, vector<8x128xf32>
    tpu.vector_store %arg4[%c0_7, %c0_8], %37 {strides = array<i32>} : memref<8x128xf32, #tpu.memory_space<vmem>>, vector<8x128xf32>,
    return
  }
  func.func @transform_0(%arg0: i32, %arg1: i32) -> i32 {
    %c0_i32 = arith.constant 0 : i32
    %c0_i32_0 = arith.constant 0 : i32
    return %c0_i32 : i32
  }
  func.func @transform_1(%arg0: i32, %arg1: i32) -> (i32, i32, i32) {
    %c0_i32 = arith.constant 0 : i32
    %c0_i32_0 = arith.constant 0 : i32
    return %c0_i32, %arg0, %arg1 : i32, i32, i32
  }
  func.func @transform_2(%arg0: i32, %arg1: i32) -> (i32, i32) {
    %c0_i32 = arith.constant 0 : i32
    return %arg0, %arg1 : i32, i32
  }
}

</mosaic_0001>

<llo_original>
// kernel: tpu_custom_call.1
$region0: #{tpu_custom_call.1}
  #allocation0 [shape = 'u32[]', space=smem, size = 0x4, offset = 0x4, fixed_abs, tag = 'smem constant byte address 0x4 - core index']
  #allocation1 [shape = 'u32[72,128]{1,0:T(1,128)}', space=vmem, size = 0x9000, scoped, tag = 'internal scratch']
  %s0 = inlined_call_operand.hbm [shape: f32[7], index: 0, kind: input, shape index: {}]
  %s1 = inlined_call_operand.hbm [shape: f32[2,8,128], index: 1, kind: input, shape index: {}]
  %s2 = inlined_call_operand.hbm [shape: f32[8,128], index: 2, kind: output, shape index: {}]
  %s3 = sld [smem:[#allocation0]]
  $region26: #{tpu_custom_call.1} parent=0
    _
  %s5 = ssub.s32 1, %s3
  %s6 = scalar_select 0, %s5, %s3
  $region1: #{tpu_custom_call.1} parent=0
    #allocation2 [shape = 'u8[512]{0}', space=smem, size = 0x200, scoped, tag = 'input window, operand 0, single buffered']
    #allocation3 [shape = 's32[1]{0}', space=sflag, size = 0x4, scoped, tag = 'scoped memory for tpu_custom_call.1']
    #allocation4 [shape = 's32[1]{0}', space=sflag, size = 0x4, scoped, tag = 'scoped memory for tpu_custom_call.1']
    #allocation5 [shape = 's32[1]{0}', space=sflag, size = 0x4, scoped, tag = 'scoped memory for tpu_custom_call.1']
    #allocation6 [shape = 'u8[8192]{0}', space=vmem, size = 0x2000, scoped, tag = 'input window, operand 1, single buffered']
    #allocation7 [shape = 'u8[4096]{0}', space=vmem, size = 0x1000, scoped, tag = 'output window, operand 0, single buffered']
    %7 = vsyncpa [#allocation5], 0
    %8 = vsyncpa [#allocation3], 0
    %9 = vsyncpa [#allocation4], 0
    // Predicated region
    $region2: #{tpu_custom_call.1} parent=1 // pred_check
      _
    $region3: #{tpu_custom_call.1} parent=1 // pred_check_branch
      %11 = sbr.rel (0) target = $region5
    $region4: #{tpu_custom_call.1} parent=1 // pred_region
      %13 = vsyncadd [#allocation5], 0
      %s15 = sshll.u32 %s0, 4
      %s16 = int_to_ptr.hbm [resolvable:$true] %s15
      %18 = dma.hbm_to_smem %s16, 16, [#allocation2], [#allocation5]
    $region5: #{tpu_custom_call.1} parent=1 // pred_fallthru
      _
    // Predicated region
    $region6: #{tpu_custom_call.1} parent=1 // pred_check
      _
    $region7: #{tpu_custom_call.1} parent=1 // pred_check_branch
      %20 = sbr.rel (0) target = $region9
    $region8: #{tpu_custom_call.1} parent=1 // pred_region
      %22 = vsyncadd [#allocation3], 0
      %s23 = sshll.u32 %s1, 4
      %s24 = int_to_ptr.hbm [resolvable:$true] %s23
      %s25 = sshll.u32 [#allocation6], 4
      %s26 = int_to_ptr.vmem [resolvable:$true] %s25
      %31 = dma.hbm_to_vmem [thread:$0]  %s24, 256, %s26, [#allocation3], 128, 128, 8
    $region9: #{tpu_custom_call.1} parent=1 // pred_fallthru
      _
    // Predicated region
    $region10: #{tpu_custom_call.1} parent=1 // pred_check
      _
    $region11: #{tpu_custom_call.1} parent=1 // pred_check_branch
      %33 = sbr.rel (0) target = $region13
    $region12: #{tpu_custom_call.1} parent=1 // pred_region
      %35 = dma.done [#allocation5], 16
    $region13: #{tpu_custom_call.1} parent=1 // pred_fallthru
      _
    // Predicated region
    $region14: #{tpu_custom_call.1} parent=1 // pred_check
      _
    $region15: #{tpu_custom_call.1} parent=1 // pred_check_branch
      %37 = sbr.rel (0) target = $region17
    $region16: #{tpu_custom_call.1} parent=1 // pred_region
      %39 = dma.done [#allocation3], 256
    $region17: #{tpu_custom_call.1} parent=1 // pred_fallthru
      _
    %40 = sfence
    %s41 = sld [smem:[#allocation2]]
    %s42 = sld [smem:[#allocation2 + $0x1]]
    %s43 = sld [smem:[#allocation2 + $0x2]]
    %s44 = sld [smem:[#allocation2 + $0x3]]
    %s45 = sld [smem:[#allocation2 + $0x4]]
    %s46 = sld [smem:[#allocation2 + $0x5]]
    %s47 = sld [smem:[#allocation2 + $0x6]]
    %v48 = vld [vmem:[#allocation6] sm:$0xff]
    %s49 = scalar_lea.vmem [#allocation6], 8
    %v50 = vld [vmem:[%s49] sm:$0xff]
    %v51 = vstv %s41
    %v52 = vmul.f32 %v48, %v51
    %v53 = vstv %s42
    %v54 = vmul.f32 %v50, %v53
    %v55 = vadd.f32 %v52, %v54
    %v56 = vstv %s46
    %v57 = vadd.f32 %v55, %v56
    %v58 = vxor.u32 %v57, 2147483648
    %v59 = vmul.f32 %v58, 1.442695
    %v60 = vpow.pop %v59
    %v61 = vadd.f32 %v60, 1.0
    %v62 = vrcp.pop %v61
    %v63 = vmul.f32 %v61, %v62
    %v64 = vsub.f32 1.0, %v63
    %v65 = vmul.f32 %v62, %v64
    %v66 = vadd.f32 %v62, %v65
    %vm67 = vweird.f32 %v61
    %vm68 = vweird.f32 %v62
    %vm69 = vmor %vm67, %vm68
    %v70 = vsel %vm69, %v62, %v66
    %v71 = vand.u32 2147483647, %v61
    %vm72 = vcmp.eq.f32.partialorder %v71, 8.507059e+37
    %v73 = vand.u32 %v61, 2147483648
    %v74 = vor.u32 1.1754944e-38, %v73
    %v75 = vsel %vm72, %v74, %v70
    %v76 = vmul.f32 1.0, %v75
    %v77 = vstv %s43
    %v78 = vmul.f32 %v48, %v77
    %v79 = vstv %s44
    %v80 = vmul.f32 %v76, %v79
    %v81 = vadd.f32 %v78, %v80
    %v82 = vstv %s45
    %v83 = vmul.f32 %v50, %v82
    %v84 = vadd.f32 %v81, %v83
    %v85 = vstv %s47
    %v86 = vadd.f32 %v84, %v85
    %v87 = vxor.u32 %v86, 2147483648
    %v88 = vmul.f32 %v87, 1.442695
    %v89 = vpow.pop %v88
    %v90 = vadd.f32 %v89, 1.0
    %v91 = vrcp.pop %v90
    %v92 = vmul.f32 %v90, %v91
    %v93 = vsub.f32 1.0, %v92
    %v94 = vmul.f32 %v91, %v93
    %v95 = vadd.f32 %v91, %v94
    %vm96 = vweird.f32 %v90
    %vm97 = vweird.f32 %v91
    %vm98 = vmor %vm96, %vm97
    %v99 = vsel %vm98, %v91, %v95
    %v100 = vand.u32 2147483647, %v90
    %vm101 = vcmp.eq.f32.partialorder %v100, 8.507059e+37
    %v102 = vand.u32 %v90, 2147483648
    %v103 = vor.u32 1.1754944e-38, %v102
    %v104 = vsel %vm101, %v103, %v99
    %v105 = vmul.f32 1.0, %v104
    %106 = vst [vmem:[#allocation7] sm:$0xff] %v105
    // Predicated region
    $region18: #{tpu_custom_call.1} parent=1 // pred_check
      _
    $region19: #{tpu_custom_call.1} parent=1 // pred_check_branch
      %108 = sbr.rel (0) target = $region21
    $region20: #{tpu_custom_call.1} parent=1 // pred_region
      %110 = vsyncadd [#allocation4], 0
      %s112 = sshll.u32 [#allocation7], 4
      %s113 = int_to_ptr.vmem [resolvable:$true] %s112
      %s114 = sshll.u32 %s2, 4
      %s115 = int_to_ptr.hbm [resolvable:$true] %s114
      %117 = dma.vmem_to_hbm [thread:$0]  %s113, 128, %s115, [#allocation4]
    $region21: #{tpu_custom_call.1} parent=1 // pred_fallthru
      _
    // Predicated region
    $region22: #{tpu_custom_call.1} parent=1 // pred_check
      _
    $region23: #{tpu_custom_call.1} parent=1 // pred_check_branch
      %119 = sbr.rel (0) target = $region25
    $region24: #{tpu_custom_call.1} parent=1 // pred_region
      %121 = dma.done [#allocation4], 128
    $region25: #{tpu_custom_call.1} parent=1 // pred_fallthru
      _
    %122 = vsyncpa [#allocation3], 1
    %123 = vsyncpa [#allocation4], 1
    %124 = vsyncpa [#allocation5], 1

</llo_original>
